<compile_context>
chip_gen: v7x
topology: tpu7x:2x2x1
jax: 0.10.0
libtpu: 0.0.40
codegen_flags: <defaults>
</compile_context>

<pallas_src>
import functools
import math

import jax
import jax.numpy as jnp
from jax.experimental import pallas as pl
from jax.experimental.pallas import tpu as pltpu

_LANES = 128
_SUBLANES = 8
_N_PREDS = 4
_DEFAULT_TILE_ROWS = 2048   # 5 streams x (2048,128) f32 x 2 buffers = 10 MiB VMEM


def _round_up(x, m):
    return (x + m - 1) // m * m


def _lbtw_kernel(p0_ref, p1_ref, p2_ref, p3_ref, tgt_ref, out_ref, *,
                 tile_rows, full_rows, rem_lanes, needs_mask):
    """One (tile_rows, 128) tile of all 4 predictions vs. one shared target tile.

    out_ref is a (32, 128) f32 block resident across the ("arbitrary") grid axis;
    sublanes [8p, 8p+8) hold the running (8,128) partial sum for prediction p.
    The final sublane+lane reduction happens in the wrapper.
    """
    j = pl.program_id(0)

    @pl.when(j == 0)
    def _init():
        out_ref[...] = jnp.zeros_like(out_ref)

    def _accumulate(valid):
        y = tgt_ref[...].astype(jnp.float32)
        for p, p_ref in enumerate((p0_ref, p1_ref, p2_ref, p3_ref)):
            x = p_ref[...].astype(jnp.float32)
            # numerically-stable BCE-with-logits (matches torch.nn.BCEWithLogitsLoss elementwise)
            loss = jnp.maximum(x, 0.0) - x * y + jnp.log1p(jnp.exp(-jnp.abs(x)))
            if valid is not None:
                loss = jnp.where(valid, loss, 0.0)
            # fold rows into an (8,128) vreg-shaped partial: pure VPU adds, no XLU reduce
            out_ref[p * _SUBLANES:(p + 1) * _SUBLANES, :] += (
                loss.reshape(-1, _SUBLANES, _LANES).sum(axis=0))

    if needs_mask:
        is_last = j == pl.num_programs(0) - 1

        @pl.when(jnp.logical_not(is_last))
        def _interior():
            _accumulate(None)          # fast path: no mask arithmetic on interior tiles

        @pl.when(is_last)
        def _ragged():
            # Row-granular validity (+ lane test for the partial last row).  Row indices fit
            # comfortably in int32 (no full flat-index product -> no overflow concern).
            row = jax.lax.broadcasted_iota(jnp.int32, (tile_rows, _LANES), 0)
            global_row = j * tile_rows + row
            valid = global_row < full_rows
            if rem_lanes:
                lane = jax.lax.broadcasted_iota(jnp.int32, (tile_rows, _LANES), 1)
                valid = valid | ((global_row == full_rows) & (lane < rem_lanes))
            _accumulate(valid)
    else:
        _accumulate(None)


def lbtw_loss(out, comb3, comb2, comb1, target, *, tile_rows=_DEFAULT_TILE_ROWS):
    """Returns (sub_loss_list, sub_loss[0], sub_loss[1], sub_loss[2], sub_loss[3])."""
    preds = (out, comb3, comb2, comb1)
    n_valid = math.prod(target.shape)                 # B*H*W*5 true element count
    rows = pl.cdiv(n_valid, _LANES)
    full_rows, rem_lanes = divmod(n_valid, _LANES)

    # Shrink the tile for small problems; keep it a multiple of 8 sublanes.
    tile_rows = min(tile_rows, _round_up(rows, _SUBLANES))
    n_steps = pl.cdiv(rows, tile_rows)
    needs_mask = (rows % tile_rows != 0) or (rem_lanes != 0)

    pad = rows * _LANES - n_valid   # < 128; non-zero only when B*H*W*5 % 128 != 0

    def _prep(a):
        flat = a.reshape(-1)                          # contiguous flatten: free
        if pad:
            # Tiny (<128 element) pad only so the lane-dense reshape is possible; the padded
            # lanes are masked inside the kernel.  Zero for the common case -> no HBM copy.
            flat = jnp.pad(flat, (0, pad))
        return flat.reshape(rows, _LANES)             # lane-dense layout: free when pad == 0

    args = [_prep(p) for p in preds] + [_prep(target)]

    kernel = functools.partial(
        _lbtw_kernel,
        tile_rows=tile_rows,
        full_rows=full_rows,
        rem_lanes=rem_lanes,
        needs_mask=needs_mask,
    )

    bytes_in = n_valid * (sum(jnp.dtype(p.dtype).itemsize for p in preds)
                          + jnp.dtype(target.dtype).itemsize)
    cost = pl.CostEstimate(
        flops=8 * _N_PREDS * n_valid,
        transcendentals=2 * _N_PREDS * n_valid,
        bytes_accessed=bytes_in + _N_PREDS * _SUBLANES * _LANES * 4,
    )

    stream_spec = pl.BlockSpec((tile_rows, _LANES), lambda j: (j, 0))

    # TODO(synk): on v7x, split the row tiles across the two TensorCores with
    # pltpu.CORE_PARALLEL / pl.core_map; kept single-core here for cross-generation safety.
    partials = pl.pallas_call(
        kernel,
        out_shape=jax.ShapeDtypeStruct((_N_PREDS * _SUBLANES, _LANES), jnp.float32),
        grid=(n_steps,),
        in_specs=[stream_spec] * 5,
        out_specs=pl.BlockSpec((_N_PREDS * _SUBLANES, _LANES), lambda j: (0, 0)),
        compiler_params=pltpu.CompilerParams(
            dimension_semantics=("arbitrary",),
            vmem_limit_bytes=32 * 1024 * 1024),
        cost_estimate=cost,
    )(*args)

    # sub_loss[i] = (1/5) * sum_c mean_c = total_sum_i / (B*H*W*5)
    losses = partials.reshape(_N_PREDS, _SUBLANES, _LANES).sum(axis=(1, 2)) / jnp.float32(n_valid)
    sub_loss = [losses[i] for i in range(_N_PREDS)]
    return sub_loss, sub_loss[0], sub_loss[1], sub_loss[2], sub_loss[3]


def _reference(out, comb3, comb2, comb1, target):
    # pure-JAX reference mirroring the PyTorch loop exactly
    outs = [out, comb3, comb2, comb1]
    subs = []
    for p in outs:
        curr = 0.0
        for c in range(5):
            x = p[..., c].astype(jnp.float32)
            y = target[..., c].astype(jnp.float32)
            l = jnp.maximum(x, 0.0) - x * y + jnp.log1p(jnp.exp(-jnp.abs(x)))
            curr = curr + jnp.mean(l)
        subs.append(curr / 5.0)
    return jnp.stack(subs)


if __name__ == "__main__":
    key = jax.random.PRNGKey(0)
    k0, k1, k2, k3, kt = jax.random.split(key, 5)
    B, H, W, C = 2, 16, 16, 5                              # small shapes, last dim = 5
    out_p = jax.random.normal(k0, (B, H, W, C), dtype=jnp.float32)
    comb3 = jax.random.normal(k1, (B, H, W, C), dtype=jnp.float32)
    comb2 = jax.random.normal(k2, (B, H, W, C), dtype=jnp.float32)
    comb1 = jax.random.normal(k3, (B, H, W, C), dtype=jnp.float32)
    target = jax.random.uniform(kt, (B, H, W, C), dtype=jnp.float32)  # BCE targets in [0,1]

    sub_loss, l0, l1, l2, l3 = lbtw_loss(out_p, comb3, comb2, comb1, target)
    got = jax.block_until_ready(jnp.stack(sub_loss))
    want = jax.block_until_ready(_reference(out_p, comb3, comb2, comb1, target))
    assert jnp.allclose(got, want, rtol=1e-5, atol=1e-5), (got, want)
    print("KERNEL_OK")
</pallas_src>

<mosaic_0001>
module attributes {stable_mosaic.version = 11 : i64} {
  func.func @_lbtw_kernel(%arg0: i32, %arg1: memref<24x128xf32, #tpu.memory_space<vmem>>, %arg2: memref<24x128xf32, #tpu.memory_space<vmem>>, %arg3: memref<24x128xf32, #tpu.memory_space<vmem>>, %arg4: memref<24x128xf32, #tpu.memory_space<vmem>>, %arg5: memref<24x128xf32, #tpu.memory_space<vmem>>, %arg6: memref<32x128xf32, #tpu.memory_space<vmem>>) attributes {dimension_semantics = [#tpu.dimension_semantics<arbitrary>], iteration_bounds = array<i64: 1>, scalar_prefetch = 0 : i64, scratch_operands = 0 : i64, tpu.core_type = #tpu.core_type<tc>, window_params = [{transform_indices = @transform_0, window_bounds = array<i64: 24, 128>}, {transform_indices = @transform_1, window_bounds = array<i64: 24, 128>}, {transform_indices = @transform_2, window_bounds = array<i64: 24, 128>}, {transform_indices = @transform_3, window_bounds = array<i64: 24, 128>}, {transform_indices = @transform_4, window_bounds = array<i64: 24, 128>}, {pipeline_mode = #tpu.pipeline_mode<synchronous>, transform_indices = @transform_5, window_bounds = array<i64: 32, 128>}]} {
    %c0_i32 = arith.constant 0 : i32
    %0 = arith.cmpi eq, %arg0, %c0_i32 : i32
    %1 = arith.extui %0 : i1 to i32
    %c0_i32_0 = arith.constant 0 : i32
    %2 = arith.cmpi ne, %1, %c0_i32_0 : i32
    scf.if %2 {
      %cst = arith.constant 0.000000e+00 : f32
      %9 = vector.broadcast %cst : f32 to vector<32x128xf32>
      %c0 = arith.constant 0 : index
      %c0_4 = arith.constant 0 : index
      %10 = vector.load %arg6[%c0, %c0_4] : memref<32x128xf32, #tpu.memory_space<vmem>>, vector<32x128xf32>
      tpu.vector_store %arg6[%c0, %c0_4], %9 {strides = array<i32>} : memref<32x128xf32, #tpu.memory_space<vmem>>, vector<32x128xf32>,
    } else {
    }
    %c0_i32_1 = arith.constant 0 : i32
    %3 = arith.cmpi eq, %arg0, %c0_i32_1 : i32
    %true = arith.constant true
    %4 = arith.xori %3, %true : i1
    %5 = arith.extui %4 : i1 to i32
    %c0_i32_2 = arith.constant 0 : i32
    %6 = arith.cmpi ne, %5, %c0_i32_2 : i32
    scf.if %6 {
      %c0 = arith.constant 0 : index
      %c0_4 = arith.constant 0 : index
      %9 = vector.load %arg5[%c0, %c0_4] : memref<24x128xf32, #tpu.memory_space<vmem>>, vector<24x128xf32>
      %c0_5 = arith.constant 0 : index
      %c0_6 = arith.constant 0 : index
      %10 = vector.load %arg1[%c0_5, %c0_6] : memref<24x128xf32, #tpu.memory_space<vmem>>, vector<24x128xf32>
      %cst = arith.constant 0.000000e+00 : f32
      %11 = vector.broadcast %cst : f32 to vector<24x128xf32>
      %12 = arith.maximumf %10, %11 : vector<24x128xf32>
      %13 = arith.mulf %10, %9 : vector<24x128xf32>
      %14 = arith.subf %12, %13 : vector<24x128xf32>
      %15 = math.absf %10 : vector<24x128xf32>
      %cst_7 = arith.constant 0.000000e+00 : f32
      %16 = vector.broadcast %cst_7 : f32 to vector<24x128xf32>
      %17 = arith.subf %16, %15 : vector<24x128xf32>
      %18 = math.exp %17 : vector<24x128xf32>
      %19 = math.log1p %18 : vector<24x128xf32>
      %20 = arith.addf %14, %19 : vector<24x128xf32>
      %c0_8 = arith.constant 0 : index
      %c0_9 = arith.constant 0 : index
      %21 = vector.load %arg6[%c0_8, %c0_9] : memref<32x128xf32, #tpu.memory_space<vmem>>, vector<8x128xf32>
      %22 = vector.shape_cast %20 : vector<24x128xf32> to vector<3x8x128xf32>
      %cst_10 = arith.constant dense<0.000000e+00> : vector<8x128xf32>
      %23 = vector.multi_reduction <add>, %22, %cst_10 [0] : vector<3x8x128xf32> to vector<8x128xf32>
      %24 = arith.addf %21, %23 : vector<8x128xf32>
      %c0_11 = arith.constant 0 : index
      %c0_12 = arith.constant 0 : index
      %25 = vector.load %arg6[%c0_11, %c0_12] : memref<32x128xf32, #tpu.memory_space<vmem>>, vector<8x128xf32>
      tpu.vector_store %arg6[%c0_11, %c0_12], %24 {strides = array<i32>} : memref<32x128xf32, #tpu.memory_space<vmem>>, vector<8x128xf32>,
      %c0_13 = arith.constant 0 : index
      %c0_14 = arith.constant 0 : index
      %26 = vector.load %arg2[%c0_13, %c0_14] : memref<24x128xf32, #tpu.memory_space<vmem>>, vector<24x128xf32>
      %cst_15 = arith.constant 0.000000e+00 : f32
      %27 = vector.broadcast %cst_15 : f32 to vector<24x128xf32>
      %28 = arith.maximumf %26, %27 : vector<24x128xf32>
      %29 = arith.mulf %26, %9 : vector<24x128xf32>
      %30 = arith.subf %28, %29 : vector<24x128xf32>
      %31 = math.absf %26 : vector<24x128xf32>
      %cst_16 = arith.constant 0.000000e+00 : f32
      %32 = vector.broadcast %cst_16 : f32 to vector<24x128xf32>
      %33 = arith.subf %32, %31 : vector<24x128xf32>
      %34 = math.exp %33 : vector<24x128xf32>
      %35 = math.log1p %34 : vector<24x128xf32>
      %36 = arith.addf %30, %35 : vector<24x128xf32>
      %c8 = arith.constant 8 : index
      %c0_17 = arith.constant 0 : index
      %37 = vector.load %arg6[%c8, %c0_17] : memref<32x128xf32, #tpu.memory_space<vmem>>, vector<8x128xf32>
      %38 = vector.shape_cast %36 : vector<24x128xf32> to vector<3x8x128xf32>
      %cst_18 = arith.constant dense<0.000000e+00> : vector<8x128xf32>
      %39 = vector.multi_reduction <add>, %38, %cst_18 [0] : vector<3x8x128xf32> to vector<8x128xf32>
      %40 = arith.addf %37, %39 : vector<8x128xf32>
      %c8_19 = arith.constant 8 : index
      %c0_20 = arith.constant 0 : index
      %41 = vector.load %arg6[%c8_19, %c0_20] : memref<32x128xf32, #tpu.memory_space<vmem>>, vector<8x128xf32>
      tpu.vector_store %arg6[%c8_19, %c0_20], %40 {strides = array<i32>} : memref<32x128xf32, #tpu.memory_space<vmem>>, vector<8x128xf32>,
      %c0_21 = arith.constant 0 : index
      %c0_22 = arith.constant 0 : index
      %42 = vector.load %arg3[%c0_21, %c0_22] : memref<24x128xf32, #tpu.memory_space<vmem>>, vector<24x128xf32>
      %cst_23 = arith.constant 0.000000e+00 : f32
      %43 = vector.broadcast %cst_23 : f32 to vector<24x128xf32>
      %44 = arith.maximumf %42, %43 : vector<24x128xf32>
      %45 = arith.mulf %42, %9 : vector<24x128xf32>
      %46 = arith.subf %44, %45 : vector<24x128xf32>
      %47 = math.absf %42 : vector<24x128xf32>
      %cst_24 = arith.constant 0.000000e+00 : f32
      %48 = vector.broadcast %cst_24 : f32 to vector<24x128xf32>
      %49 = arith.subf %48, %47 : vector<24x128xf32>
      %50 = math.exp %49 : vector<24x128xf32>
      %51 = math.log1p %50 : vector<24x128xf32>
      %52 = arith.addf %46, %51 : vector<24x128xf32>
      %c16 = arith.constant 16 : index
      %c0_25 = arith.constant 0 : index
      %53 = vector.load %arg6[%c16, %c0_25] : memref<32x128xf32, #tpu.memory_space<vmem>>, vector<8x128xf32>
      %54 = vector.shape_cast %52 : vector<24x128xf32> to vector<3x8x128xf32>
      %cst_26 = arith.constant dense<0.000000e+00> : vector<8x128xf32>
      %55 = vector.multi_reduction <add>, %54, %cst_26 [0] : vector<3x8x128xf32> to vector<8x128xf32>
      %56 = arith.addf %53, %55 : vector<8x128xf32>
      %c16_27 = arith.constant 16 : index
      %c0_28 = arith.constant 0 : index
      %57 = vector.load %arg6[%c16_27, %c0_28] : memref<32x128xf32, #tpu.memory_space<vmem>>, vector<8x128xf32>
      tpu.vector_store %arg6[%c16_27, %c0_28], %56 {strides = array<i32>} : memref<32x128xf32, #tpu.memory_space<vmem>>, vector<8x128xf32>,
      %c0_29 = arith.constant 0 : index
      %c0_30 = arith.constant 0 : index
      %58 = vector.load %arg4[%c0_29, %c0_30] : memref<24x128xf32, #tpu.memory_space<vmem>>, vector<24x128xf32>
      %cst_31 = arith.constant 0.000000e+00 : f32
      %59 = vector.broadcast %cst_31 : f32 to vector<24x128xf32>
      %60 = arith.maximumf %58, %59 : vector<24x128xf32>
      %61 = arith.mulf %58, %9 : vector<24x128xf32>
      %62 = arith.subf %60, %61 : vector<24x128xf32>
      %63 = math.absf %58 : vector<24x128xf32>
      %cst_32 = arith.constant 0.000000e+00 : f32
      %64 = vector.broadcast %cst_32 : f32 to vector<24x128xf32>
      %65 = arith.subf %64, %63 : vector<24x128xf32>
      %66 = math.exp %65 : vector<24x128xf32>
      %67 = math.log1p %66 : vector<24x128xf32>
      %68 = arith.addf %62, %67 : vector<24x128xf32>
      %c24 = arith.constant 24 : index
      %c0_33 = arith.constant 0 : index
      %69 = vector.load %arg6[%c24, %c0_33] : memref<32x128xf32, #tpu.memory_space<vmem>>, vector<8x128xf32>
      %70 = vector.shape_cast %68 : vector<24x128xf32> to vector<3x8x128xf32>
      %cst_34 = arith.constant dense<0.000000e+00> : vector<8x128xf32>
      %71 = vector.multi_reduction <add>, %70, %cst_34 [0] : vector<3x8x128xf32> to vector<8x128xf32>
      %72 = arith.addf %69, %71 : vector<8x128xf32>
      %c24_35 = arith.constant 24 : index
      %c0_36 = arith.constant 0 : index
      %73 = vector.load %arg6[%c24_35, %c0_36] : memref<32x128xf32, #tpu.memory_space<vmem>>, vector<8x128xf32>
      tpu.vector_store %arg6[%c24_35, %c0_36], %72 {strides = array<i32>} : memref<32x128xf32, #tpu.memory_space<vmem>>, vector<8x128xf32>,
    } else {
    }
    %7 = arith.extui %3 : i1 to i32
    %c0_i32_3 = arith.constant 0 : i32
    %8 = arith.cmpi ne, %7, %c0_i32_3 : i32
    scf.if %8 {
      %9 = tpu.iota {dimensions = array<i32: 0>} : vector<24x128xi32>
      %c24_i32 = arith.constant 24 : i32
      %10 = arith.muli %arg0, %c24_i32 : i32
      %11 = vector.broadcast %10 : i32 to vector<24x128xi32>
      %12 = arith.addi %11, %9 : vector<24x128xi32>
      %c20_i32 = arith.constant 20 : i32
      %13 = vector.broadcast %c20_i32 : i32 to vector<24x128xi32>
      %14 = arith.cmpi slt, %12, %13 : vector<24x128xi32>
      %c0 = arith.constant 0 : index
      %c0_4 = arith.constant 0 : index
      %15 = vector.load %arg5[%c0, %c0_4] : memref<24x128xf32, #tpu.memory_space<vmem>>, vector<24x128xf32>
      %c0_5 = arith.constant 0 : index
      %c0_6 = arith.constant 0 : index
      %16 = vector.load %arg1[%c0_5, %c0_6] : memref<24x128xf32, #tpu.memory_space<vmem>>, vector<24x128xf32>
      %cst = arith.constant 0.000000e+00 : f32
      %17 = vector.broadcast %cst : f32 to vector<24x128xf32>
      %18 = arith.maximumf %16, %17 : vector<24x128xf32>
      %19 = arith.mulf %16, %15 : vector<24x128xf32>
      %20 = arith.subf %18, %19 : vector<24x128xf32>
      %21 = math.absf %16 : vector<24x128xf32>
      %cst_7 = arith.constant 0.000000e+00 : f32
      %22 = vector.broadcast %cst_7 : f32 to vector<24x128xf32>
      %23 = arith.subf %22, %21 : vector<24x128xf32>
      %24 = math.exp %23 : vector<24x128xf32>
      %25 = math.log1p %24 : vector<24x128xf32>
      %26 = arith.addf %20, %25 : vector<24x128xf32>
      %cst_8 = arith.constant 0.000000e+00 : f32
      %27 = vector.broadcast %cst_8 : f32 to vector<24x128xf32>
      %28 = arith.select %14, %26, %27 : vector<24x128xi1>, vector<24x128xf32>
      %c0_9 = arith.constant 0 : index
      %c0_10 = arith.constant 0 : index
      %29 = vector.load %arg6[%c0_9, %c0_10] : memref<32x128xf32, #tpu.memory_space<vmem>>, vector<8x128xf32>
      %30 = vector.shape_cast %28 : vector<24x128xf32> to vector<3x8x128xf32>
      %cst_11 = arith.constant dense<0.000000e+00> : vector<8x128xf32>
      %31 = vector.multi_reduction <add>, %30, %cst_11 [0] : vector<3x8x128xf32> to vector<8x128xf32>
      %32 = arith.addf %29, %31 : vector<8x128xf32>
      %c0_12 = arith.constant 0 : index
      %c0_13 = arith.constant 0 : index
      %33 = vector.load %arg6[%c0_12, %c0_13] : memref<32x128xf32, #tpu.memory_space<vmem>>, vector<8x128xf32>
      tpu.vector_store %arg6[%c0_12, %c0_13], %32 {strides = array<i32>} : memref<32x128xf32, #tpu.memory_space<vmem>>, vector<8x128xf32>,
      %c0_14 = arith.constant 0 : index
      %c0_15 = arith.constant 0 : index
      %34 = vector.load %arg2[%c0_14, %c0_15] : memref<24x128xf32, #tpu.memory_space<vmem>>, vector<24x128xf32>
      %cst_16 = arith.constant 0.000000e+00 : f32
      %35 = vector.broadcast %cst_16 : f32 to vector<24x128xf32>
      %36 = arith.maximumf %34, %35 : vector<24x128xf32>
      %37 = arith.mulf %34, %15 : vector<24x128xf32>
      %38 = arith.subf %36, %37 : vector<24x128xf32>
      %39 = math.absf %34 : vector<24x128xf32>
      %cst_17 = arith.constant 0.000000e+00 : f32
      %40 = vector.broadcast %cst_17 : f32 to vector<24x128xf32>
      %41 = arith.subf %40, %39 : vector<24x128xf32>
      %42 = math.exp %41 : vector<24x128xf32>
      %43 = math.log1p %42 : vector<24x128xf32>
      %44 = arith.addf %38, %43 : vector<24x128xf32>
      %cst_18 = arith.constant 0.000000e+00 : f32
      %45 = vector.broadcast %cst_18 : f32 to vector<24x128xf32>
      %46 = arith.select %14, %44, %45 : vector<24x128xi1>, vector<24x128xf32>
      %c8 = arith.constant 8 : index
      %c0_19 = arith.constant 0 : index
      %47 = vector.load %arg6[%c8, %c0_19] : memref<32x128xf32, #tpu.memory_space<vmem>>, vector<8x128xf32>
      %48 = vector.shape_cast %46 : vector<24x128xf32> to vector<3x8x128xf32>
      %cst_20 = arith.constant dense<0.000000e+00> : vector<8x128xf32>
      %49 = vector.multi_reduction <add>, %48, %cst_20 [0] : vector<3x8x128xf32> to vector<8x128xf32>
      %50 = arith.addf %47, %49 : vector<8x128xf32>
      %c8_21 = arith.constant 8 : index
      %c0_22 = arith.constant 0 : index
      %51 = vector.load %arg6[%c8_21, %c0_22] : memref<32x128xf32, #tpu.memory_space<vmem>>, vector<8x128xf32>
      tpu.vector_store %arg6[%c8_21, %c0_22], %50 {strides = array<i32>} : memref<32x128xf32, #tpu.memory_space<vmem>>, vector<8x128xf32>,
      %c0_23 = arith.constant 0 : index
      %c0_24 = arith.constant 0 : index
      %52 = vector.load %arg3[%c0_23, %c0_24] : memref<24x128xf32, #tpu.memory_space<vmem>>, vector<24x128xf32>
      %cst_25 = arith.constant 0.000000e+00 : f32
      %53 = vector.broadcast %cst_25 : f32 to vector<24x128xf32>
      %54 = arith.maximumf %52, %53 : vector<24x128xf32>
      %55 = arith.mulf %52, %15 : vector<24x128xf32>
      %56 = arith.subf %54, %55 : vector<24x128xf32>
      %57 = math.absf %52 : vector<24x128xf32>
      %cst_26 = arith.constant 0.000000e+00 : f32
      %58 = vector.broadcast %cst_26 : f32 to vector<24x128xf32>
      %59 = arith.subf %58, %57 : vector<24x128xf32>
      %60 = math.exp %59 : vector<24x128xf32>
      %61 = math.log1p %60 : vector<24x128xf32>
      %62 = arith.addf %56, %61 : vector<24x128xf32>
      %cst_27 = arith.constant 0.000000e+00 : f32
      %63 = vector.broadcast %cst_27 : f32 to vector<24x128xf32>
      %64 = arith.select %14, %62, %63 : vector<24x128xi1>, vector<24x128xf32>
      %c16 = arith.constant 16 : index
      %c0_28 = arith.constant 0 : index
      %65 = vector.load %arg6[%c16, %c0_28] : memref<32x128xf32, #tpu.memory_space<vmem>>, vector<8x128xf32>
      %66 = vector.shape_cast %64 : vector<24x128xf32> to vector<3x8x128xf32>
      %cst_29 = arith.constant dense<0.000000e+00> : vector<8x128xf32>
      %67 = vector.multi_reduction <add>, %66, %cst_29 [0] : vector<3x8x128xf32> to vector<8x128xf32>
      %68 = arith.addf %65, %67 : vector<8x128xf32>
      %c16_30 = arith.constant 16 : index
      %c0_31 = arith.constant 0 : index
      %69 = vector.load %arg6[%c16_30, %c0_31] : memref<32x128xf32, #tpu.memory_space<vmem>>, vector<8x128xf32>
      tpu.vector_store %arg6[%c16_30, %c0_31], %68 {strides = array<i32>} : memref<32x128xf32, #tpu.memory_space<vmem>>, vector<8x128xf32>,
      %c0_32 = arith.constant 0 : index
      %c0_33 = arith.constant 0 : index
      %70 = vector.load %arg4[%c0_32, %c0_33] : memref<24x128xf32, #tpu.memory_space<vmem>>, vector<24x128xf32>
      %cst_34 = arith.constant 0.000000e+00 : f32
      %71 = vector.broadcast %cst_34 : f32 to vector<24x128xf32>
      %72 = arith.maximumf %70, %71 : vector<24x128xf32>
      %73 = arith.mulf %70, %15 : vector<24x128xf32>
      %74 = arith.subf %72, %73 : vector<24x128xf32>
      %75 = math.absf %70 : vector<24x128xf32>
      %cst_35 = arith.constant 0.000000e+00 : f32
      %76 = vector.broadcast %cst_35 : f32 to vector<24x128xf32>
      %77 = arith.subf %76, %75 : vector<24x128xf32>
      %78 = math.exp %77 : vector<24x128xf32>
      %79 = math.log1p %78 : vector<24x128xf32>
      %80 = arith.addf %74, %79 : vector<24x128xf32>
      %cst_36 = arith.constant 0.000000e+00 : f32
      %81 = vector.broadcast %cst_36 : f32 to vector<24x128xf32>
      %82 = arith.select %14, %80, %81 : vector<24x128xi1>, vector<24x128xf32>
      %c24 = arith.constant 24 : index
      %c0_37 = arith.constant 0 : index
      %83 = vector.load %arg6[%c24, %c0_37] : memref<32x128xf32, #tpu.memory_space<vmem>>, vector<8x128xf32>
      %84 = vector.shape_cast %82 : vector<24x128xf32> to vector<3x8x128xf32>
      %cst_38 = arith.constant dense<0.000000e+00> : vector<8x128xf32>
      %85 = vector.multi_reduction <add>, %84, %cst_38 [0] : vector<3x8x128xf32> to vector<8x128xf32>
      %86 = arith.addf %83, %85 : vector<8x128xf32>
      %c24_39 = arith.constant 24 : index
      %c0_40 = arith.constant 0 : index
      %87 = vector.load %arg6[%c24_39, %c0_40] : memref<32x128xf32, #tpu.memory_space<vmem>>, vector<8x128xf32>
      tpu.vector_store %arg6[%c24_39, %c0_40], %86 {strides = array<i32>} : memref<32x128xf32, #tpu.memory_space<vmem>>, vector<8x128xf32>,
    } else {
    }
    return
  }
  func.func @transform_0(%arg0: i32) -> (i32, i32) {
    %c0_i32 = arith.constant 0 : i32
    %c0_i32_0 = arith.constant 0 : i32
    return %arg0, %c0_i32 : i32, i32
  }
  func.func @transform_1(%arg0: i32) -> (i32, i32) {
    %c0_i32 = arith.constant 0 : i32
    %c0_i32_0 = arith.constant 0 : i32
    return %arg0, %c0_i32 : i32, i32
  }
  func.func @transform_2(%arg0: i32) -> (i32, i32) {
    %c0_i32 = arith.constant 0 : i32
    %c0_i32_0 = arith.constant 0 : i32
    return %arg0, %c0_i32 : i32, i32
  }
  func.func @transform_3(%arg0: i32) -> (i32, i32) {
    %c0_i32 = arith.constant 0 : i32
    %c0_i32_0 = arith.constant 0 : i32
    return %arg0, %c0_i32 : i32, i32
  }
  func.func @transform_4(%arg0: i32) -> (i32, i32) {
    %c0_i32 = arith.constant 0 : i32
    %c0_i32_0 = arith.constant 0 : i32
    return %arg0, %c0_i32 : i32, i32
  }
  func.func @transform_5(%arg0: i32) -> (i32, i32) {
    %c0_i32 = arith.constant 0 : i32
    %c0_i32_0 = arith.constant 0 : i32
    %c0_i32_1 = arith.constant 0 : i32
    return %c0_i32, %c0_i32_0 : i32, i32
  }
}

</mosaic_0001>

<llo_original>
// kernel: tpu_custom_call.1
$region0: #{tpu_custom_call.1}
  #allocation0 [shape = 'u32[]', space=smem, size = 0x4, offset = 0x4, fixed_abs, tag = 'smem constant byte address 0x4 - core index']
  #allocation1 [shape = 'u32[144,128]{1,0:T(1,128)}', space=vmem, size = 0x12000, scoped, tag = 'internal scratch']
  %s0 = inlined_call_operand.hbm [shape: f32[20,128], index: 0, kind: input, shape index: {}]
  %s1 = inlined_call_operand.hbm [shape: f32[20,128], index: 1, kind: input, shape index: {}]
  %s2 = inlined_call_operand.hbm [shape: f32[20,128], index: 2, kind: input, shape index: {}]
  %s3 = inlined_call_operand.hbm [shape: f32[20,128], index: 3, kind: input, shape index: {}]
  %s4 = inlined_call_operand.hbm [shape: f32[20,128], index: 4, kind: input, shape index: {}]
  %s5 = inlined_call_operand.hbm [shape: f32[32,128], index: 5, kind: output, shape index: {}]
  %s6 = sld [smem:[#allocation0]]
  $region62: #{tpu_custom_call.1} parent=0
    _
  %s8 = ssub.s32 1, %s6
  %s9 = scalar_select 0, %s8, %s6
  $region1: #{tpu_custom_call.1} parent=0
    #allocation2 [shape = 'u8[12288]{0}', space=vmem, size = 0x3000, scoped, tag = 'input window, operand 0, single buffered']
    #allocation3 [shape = 's32[1]{0}', space=sflag, size = 0x4, scoped, tag = 'scoped memory for tpu_custom_call.1']
    #allocation4 [shape = 's32[1]{0}', space=sflag, size = 0x4, scoped, tag = 'scoped memory for tpu_custom_call.1']
    #allocation5 [shape = 'u8[12288]{0}', space=vmem, size = 0x3000, scoped, tag = 'input window, operand 1, single buffered']
    #allocation6 [shape = 's32[1]{0}', space=sflag, size = 0x4, scoped, tag = 'scoped memory for tpu_custom_call.1']
    #allocation7 [shape = 'u8[12288]{0}', space=vmem, size = 0x3000, scoped, tag = 'input window, operand 2, single buffered']
    #allocation8 [shape = 'u8[12288]{0}', space=vmem, size = 0x3000, scoped, tag = 'input window, operand 3, single buffered']
    #allocation9 [shape = 's32[1]{0}', space=sflag, size = 0x4, scoped, tag = 'scoped memory for tpu_custom_call.1']
    #allocation10 [shape = 'u8[12288]{0}', space=vmem, size = 0x3000, scoped, tag = 'input window, operand 4, single buffered']
    #allocation11 [shape = 'u8[16384]{0}', space=vmem, size = 0x4000, scoped, tag = 'output window, operand 0, single buffered']
    %10 = vsyncpa [#allocation3], 0
    %11 = vsyncpa [#allocation6], 0
    %12 = vsyncpa [#allocation9], 0
    %13 = vsyncpa [#allocation4], 0
    // Predicated region
    $region2: #{tpu_custom_call.1} parent=1 // pred_check
      _
    $region3: #{tpu_custom_call.1} parent=1 // pred_check_branch
      %15 = sbr.rel (0) target = $region5
    $region4: #{tpu_custom_call.1} parent=1 // pred_region
      %s17 = ssub.s32 384, 384
      %18 = vsyncadd [#allocation3], %s17
      %s19 = sshll.u32 [#allocation2], 4
      %s20 = int_to_ptr.vmem [resolvable:$true] %s19
      %25 = dma.hbm_to_vmem [thread:$0]  %s0, 384, %s20, [#allocation3], 128, 128, 8
    $region5: #{tpu_custom_call.1} parent=1 // pred_fallthru
      _
    // Predicated region
    $region6: #{tpu_custom_call.1} parent=1 // pred_check
      _
    $region7: #{tpu_custom_call.1} parent=1 // pred_check_branch
      %27 = sbr.rel (0) target = $region9
    $region8: #{tpu_custom_call.1} parent=1 // pred_region
      %s29 = ssub.s32 384, 384
      %30 = vsyncadd [#allocation6], %s29
      %s31 = sshll.u32 [#allocation5], 4
      %s32 = int_to_ptr.vmem [resolvable:$true] %s31
      %37 = dma.hbm_to_vmem [thread:$0]  %s1, 384, %s32, [#allocation6], 128, 128, 8
    $region9: #{tpu_custom_call.1} parent=1 // pred_fallthru
      _
    // Predicated region
    $region10: #{tpu_custom_call.1} parent=1 // pred_check
      _
    $region11: #{tpu_custom_call.1} parent=1 // pred_check_branch
      %39 = sbr.rel (0) target = $region13
    $region12: #{tpu_custom_call.1} parent=1 // pred_region
      %s41 = ssub.s32 384, 384
      %42 = vsyncadd [#allocation6], %s41
      %s43 = sshll.u32 [#allocation7], 4
      %s44 = int_to_ptr.vmem [resolvable:$true] %s43
      %49 = dma.hbm_to_vmem [thread:$0]  %s2, 384, %s44, [#allocation6], 128, 128, 8
    $region13: #{tpu_custom_call.1} parent=1 // pred_fallthru
      _
    // Predicated region
    $region14: #{tpu_custom_call.1} parent=1 // pred_check
      _
    $region15: #{tpu_custom_call.1} parent=1 // pred_check_branch
      %51 = sbr.rel (0) target = $region17
    $region16: #{tpu_custom_call.1} parent=1 // pred_region
      %s53 = ssub.s32 384, 384
      %54 = vsyncadd [#allocation9], %s53
      %s55 = sshll.u32 [#allocation8], 4
      %s56 = int_to_ptr.vmem [resolvable:$true] %s55
      %61 = dma.hbm_to_vmem [thread:$0]  %s3, 384, %s56, [#allocation9], 128, 128, 8
    $region17: #{tpu_custom_call.1} parent=1 // pred_fallthru
      _
    // Predicated region
    $region18: #{tpu_custom_call.1} parent=1 // pred_check
      _
    $region19: #{tpu_custom_call.1} parent=1 // pred_check_branch
      %63 = sbr.rel (0) target = $region21
    $region20: #{tpu_custom_call.1} parent=1 // pred_region
      %s65 = ssub.s32 384, 384
      %66 = vsyncadd [#allocation9], %s65
      %s67 = sshll.u32 [#allocation10], 4
      %s68 = int_to_ptr.vmem [resolvable:$true] %s67
      %73 = dma.hbm_to_vmem [thread:$0]  %s4, 384, %s68, [#allocation9], 128, 128, 8
    $region21: #{tpu_custom_call.1} parent=1 // pred_fallthru
      _
    // Predicated region
    $region22: #{tpu_custom_call.1} parent=1 // pred_check
      _
    $region23: #{tpu_custom_call.1} parent=1 // pred_check_branch
      %75 = sbr.rel (0) target = $region25
    $region24: #{tpu_custom_call.1} parent=1 // pred_region
      %76 = dma.done [#allocation3], 384
    $region25: #{tpu_custom_call.1} parent=1 // pred_fallthru
      _
    // Predicated region
    $region26: #{tpu_custom_call.1} parent=1 // pred_check
      _
    $region27: #{tpu_custom_call.1} parent=1 // pred_check_branch
      %78 = sbr.rel (0) target = $region29
    $region28: #{tpu_custom_call.1} parent=1 // pred_region
      %79 = dma.done [#allocation6], 384
    $region29: #{tpu_custom_call.1} parent=1 // pred_fallthru
      _
    // Predicated region
    $region30: #{tpu_custom_call.1} parent=1 // pred_check
      _
    $region31: #{tpu_custom_call.1} parent=1 // pred_check_branch
      %81 = sbr.rel (0) target = $region33
    $region32: #{tpu_custom_call.1} parent=1 // pred_region
      %82 = dma.done [#allocation6], 384
    $region33: #{tpu_custom_call.1} parent=1 // pred_fallthru
      _
    // Predicated region
    $region34: #{tpu_custom_call.1} parent=1 // pred_check
      _
    $region35: #{tpu_custom_call.1} parent=1 // pred_check_branch
      %84 = sbr.rel (0) target = $region37
    $region36: #{tpu_custom_call.1} parent=1 // pred_region
      %85 = dma.done [#allocation9], 384
    $region37: #{tpu_custom_call.1} parent=1 // pred_fallthru
      _
    // Predicated region
    $region38: #{tpu_custom_call.1} parent=1 // pred_check
      _
    $region39: #{tpu_custom_call.1} parent=1 // pred_check_branch
      %87 = sbr.rel (0) target = $region41
    $region40: #{tpu_custom_call.1} parent=1 // pred_region
      %88 = dma.done [#allocation9], 384
    $region41: #{tpu_custom_call.1} parent=1 // pred_fallthru
      _
    %p89 = scmp.eq.s32.totalorder 0, 0
    // Predicated region
    $region42: #{tpu_custom_call.1} parent=1 // pred_check
      %p90 = pneg %p89
    $region43: #{tpu_custom_call.1} parent=1 // pred_check_branch
      %92 = sbr.rel (%p90) target = $region45
    $region44: #{tpu_custom_call.1} parent=1 // pred_region
      %93 = vst [vmem:[#allocation11] sm:$0xff] 0.0
      %94 = vst [vmem:[#allocation11 + $0x8] sm:$0xff] 0.0
      %95 = vst [vmem:[#allocation11 + $0x10] sm:$0xff] 0.0
      %96 = vst [vmem:[#allocation11 + $0x18] sm:$0xff] 0.0
    $region45: #{tpu_custom_call.1} parent=1 // pred_fallthru
      _
    %p97 = scmp.ne.s32.totalorder 0, 0
    // Predicated region
    $region46: #{tpu_custom_call.1} parent=1 // pred_check
      %p98 = pneg %p97
    $region47: #{tpu_custom_call.1} parent=1 // pred_check_branch
      %100 = sbr.rel (%p98) target = $region49
    $region48: #{tpu_custom_call.1} parent=1 // pred_region
      %v101 = vld [vmem:[#allocation10] sm:$0xff]
      %v102 = vld [vmem:[#allocation10 + $0x8] sm:$0xff]
      %v103 = vld [vmem:[#allocation10 + $0x10] sm:$0xff]
      %v104 = vld [vmem:[#allocation2] sm:$0xff]
      %v105 = vld [vmem:[#allocation2 + $0x8] sm:$0xff]
      %v106 = vld [vmem:[#allocation2 + $0x10] sm:$0xff]
      %v107 = vmax.f32 %v104, 0.0
      %v108 = vmax.f32 %v105, 0.0
      %v109 = vmax.f32 %v106, 0.0
      %v110 = vmul.f32 %v104, %v101
      %v111 = vmul.f32 %v105, %v102
      %v112 = vmul.f32 %v106, %v103
      %v113 = vsub.f32 %v107, %v110
      %v114 = vsub.f32 %v108, %v111
      %v115 = vsub.f32 %v109, %v112
      %v116 = vand.u32 2147483647, %v104
      %v117 = vand.u32 2147483647, %v105
      %v118 = vand.u32 2147483647, %v106
      %v119 = vsub.f32 0.0, %v116
      %v120 = vsub.f32 0.0, %v117
      %v121 = vsub.f32 0.0, %v118
      %v122 = vmul.f32 %v119, 1.442695
      %v123 = vpow.pop %v122
      %v124 = vmul.f32 %v120, 1.442695
      %v125 = vpow.pop %v124
      %v126 = vmul.f32 %v121, 1.442695
      %v127 = vpow.pop %v126
      %v128 = vadd.f32 %v123, 1.0
      %v129 = vlog2.pop %v128
      %v130 = vmul.f32 %v129, 0.6931472
      %v131 = vmul.f32 -0.5, %v123
      %v132 = vadd.f32 %v131, 1.0
      %v133 = vmul.f32 %v132, %v123
      %v134 = vand.u32 2147483647, %v123
      %vm135 = vcmp.lt.f32.partialorder %v134, 0.0004427343
      %v136 = vsel %vm135, %v133, %v130
      %v137 = vadd.f32 %v125, 1.0
      %v138 = vlog2.pop %v137
      %v139 = vmul.f32 %v138, 0.6931472
      %v140 = vmul.f32 -0.5, %v125
      %v141 = vadd.f32 %v140, 1.0
      %v142 = vmul.f32 %v141, %v125
      %v143 = vand.u32 2147483647, %v125
      %vm144 = vcmp.lt.f32.partialorder %v143, 0.0004427343
      %v145 = vsel %vm144, %v142, %v139
      %v146 = vadd.f32 %v127, 1.0
      %v147 = vlog2.pop %v146
      %v148 = vmul.f32 %v147, 0.6931472
      %v149 = vmul.f32 -0.5, %v127
      %v150 = vadd.f32 %v149, 1.0
      %v151 = vmul.f32 %v150, %v127
      %v152 = vand.u32 2147483647, %v127
      %vm153 = vcmp.lt.f32.partialorder %v152, 0.0004427343
      %v154 = vsel %vm153, %v151, %v148
      %v155 = vadd.f32 %v113, %v136
      %v156 = vadd.f32 %v114, %v145
      %v157 = vadd.f32 %v115, %v154
      %v158 = vld [vmem:[#allocation11] sm:$0xff]
      %v159 = vadd.f32 %v155, %v156
      %v160 = vadd.f32 %v159, %v157
      %v161 = vadd.f32 %v158, %v160
      %162 = vst [vmem:[#allocation11] sm:$0xff] %v161
      %v163 = vld [vmem:[#allocation5] sm:$0xff]
      %v164 = vld [vmem:[#allocation5 + $0x8] sm:$0xff]
      %v165 = vld [vmem:[#allocation5 + $0x10] sm:$0xff]
      %v166 = vmax.f32 %v163, 0.0
      %v167 = vmax.f32 %v164, 0.0
      %v168 = vmax.f32 %v165, 0.0
      %v169 = vmul.f32 %v163, %v101
      %v170 = vmul.f32 %v164, %v102
      %v171 = vmul.f32 %v165, %v103
      %v172 = vsub.f32 %v166, %v169
      %v173 = vsub.f32 %v167, %v170
      %v174 = vsub.f32 %v168, %v171
      %v175 = vand.u32 2147483647, %v163
      %v176 = vand.u32 2147483647, %v164
      %v177 = vand.u32 2147483647, %v165
      %v178 = vsub.f32 0.0, %v175
      %v179 = vsub.f32 0.0, %v176
      %v180 = vsub.f32 0.0, %v177
      %v181 = vmul.f32 %v178, 1.442695
      %v182 = vpow.pop %v181
      %v183 = vmul.f32 %v179, 1.442695
      %v184 = vpow.pop %v183
      %v185 = vmul.f32 %v180, 1.442695
      %v186 = vpow.pop %v185
      %v187 = vadd.f32 %v182, 1.0
      %v188 = vlog2.pop %v187
      %v189 = vmul.f32 %v188, 0.6931472
      %v190 = vmul.f32 -0.5, %v182
      %v191 = vadd.f32 %v190, 1.0
      %v192 = vmul.f32 %v191, %v182
      %v193 = vand.u32 2147483647, %v182
      %vm194 = vcmp.lt.f32.partialorder %v193, 0.0004427343
      %v195 = vsel %vm194, %v192, %v189
      %v196 = vadd.f32 %v184, 1.0
      %v197 = vlog2.pop %v196
      %v198 = vmul.f32 %v197, 0.6931472
      %v199 = vmul.f32 -0.5, %v184
      %v200 = vadd.f32 %v199, 1.0
      %v201 = vmul.f32 %v200, %v184
      %v202 = vand.u32 2147483647, %v184
      %vm203 = vcmp.lt.f32.partialorder %v202, 0.0004427343
      %v204 = vsel %vm203, %v201, %v198
      %v205 = vadd.f32 %v186, 1.0
      %v206 = vlog2.pop %v205
      %v207 = vmul.f32 %v206, 0.6931472
      %v208 = vmul.f32 -0.5, %v186
      %v209 = vadd.f32 %v208, 1.0
      %v210 = vmul.f32 %v209, %v186
      %v211 = vand.u32 2147483647, %v186
      %vm212 = vcmp.lt.f32.partialorder %v211, 0.0004427343
      %v213 = vsel %vm212, %v210, %v207
      %v214 = vadd.f32 %v172, %v195
      %v215 = vadd.f32 %v173, %v204
      %v216 = vadd.f32 %v174, %v213
      %v217 = vld [vmem:[#allocation11 + $0x8] sm:$0xff]
      %v218 = vadd.f32 %v214, %v215
      %v219 = vadd.f32 %v218, %v216
      %v220 = vadd.f32 %v217, %v219
      %221 = vst [vmem:[#allocation11 + $0x8] sm:$0xff] %v220
      %v222 = vld [vmem:[#allocation7] sm:$0xff]
      %v223 = vld [vmem:[#allocation7 + $0x8] sm:$0xff]
      %v224 = vld [vmem:[#allocation7 + $0x10] sm:$0xff]
      %v225 = vmax.f32 %v222, 0.0
      %v226 = vmax.f32 %v223, 0.0
      %v227 = vmax.f32 %v224, 0.0
      %v228 = vmul.f32 %v222, %v101
      %v229 = vmul.f32 %v223, %v102
      %v230 = vmul.f32 %v224, %v103
      %v231 = vsub.f32 %v225, %v228
      %v232 = vsub.f32 %v226, %v229
      %v233 = vsub.f32 %v227, %v230
      %v234 = vand.u32 2147483647, %v222
      %v235 = vand.u32 2147483647, %v223
      %v236 = vand.u32 2147483647, %v224
      %v237 = vsub.f32 0.0, %v234
      %v238 = vsub.f32 0.0, %v235
      %v239 = vsub.f32 0.0, %v236
      %v240 = vmul.f32 %v237, 1.442695
      %v241 = vpow.pop %v240
      %v242 = vmul.f32 %v238, 1.442695
      %v243 = vpow.pop %v242
      %v244 = vmul.f32 %v239, 1.442695
      %v245 = vpow.pop %v244
      %v246 = vadd.f32 %v241, 1.0
      %v247 = vlog2.pop %v246
      %v248 = vmul.f32 %v247, 0.6931472
      %v249 = vmul.f32 -0.5, %v241
      %v250 = vadd.f32 %v249, 1.0
      %v251 = vmul.f32 %v250, %v241
      %v252 = vand.u32 2147483647, %v241
      %vm253 = vcmp.lt.f32.partialorder %v252, 0.0004427343
      %v254 = vsel %vm253, %v251, %v248
      %v255 = vadd.f32 %v243, 1.0
      %v256 = vlog2.pop %v255
      %v257 = vmul.f32 %v256, 0.6931472
      %v258 = vmul.f32 -0.5, %v243
      %v259 = vadd.f32 %v258, 1.0
      %v260 = vmul.f32 %v259, %v243
      %v261 = vand.u32 2147483647, %v243
      %vm262 = vcmp.lt.f32.partialorder %v261, 0.0004427343
      %v263 = vsel %vm262, %v260, %v257
      %v264 = vadd.f32 %v245, 1.0
      %v265 = vlog2.pop %v264
      %v266 = vmul.f32 %v265, 0.6931472
      %v267 = vmul.f32 -0.5, %v245
      %v268 = vadd.f32 %v267, 1.0
      %v269 = vmul.f32 %v268, %v245
      %v270 = vand.u32 2147483647, %v245
      %vm271 = vcmp.lt.f32.partialorder %v270, 0.0004427343
      %v272 = vsel %vm271, %v269, %v266
      %v273 = vadd.f32 %v231, %v254
      %v274 = vadd.f32 %v232, %v263
      %v275 = vadd.f32 %v233, %v272
      %v276 = vld [vmem:[#allocation11 + $0x10] sm:$0xff]
      %v277 = vadd.f32 %v273, %v274
      %v278 = vadd.f32 %v277, %v275
      %v279 = vadd.f32 %v276, %v278
      %280 = vst [vmem:[#allocation11 + $0x10] sm:$0xff] %v279
      %v281 = vld [vmem:[#allocation8] sm:$0xff]
      %v282 = vld [vmem:[#allocation8 + $0x8] sm:$0xff]
      %v283 = vld [vmem:[#allocation8 + $0x10] sm:$0xff]
      %v284 = vmax.f32 %v281, 0.0
      %v285 = vmax.f32 %v282, 0.0
      %v286 = vmax.f32 %v283, 0.0
      %v287 = vmul.f32 %v281, %v101
      %v288 = vmul.f32 %v282, %v102
      %v289 = vmul.f32 %v283, %v103
      %v290 = vsub.f32 %v284, %v287
      %v291 = vsub.f32 %v285, %v288
      %v292 = vsub.f32 %v286, %v289
      %v293 = vand.u32 2147483647, %v281
      %v294 = vand.u32 2147483647, %v282
      %v295 = vand.u32 2147483647, %v283
      %v296 = vsub.f32 0.0, %v293
      %v297 = vsub.f32 0.0, %v294
      %v298 = vsub.f32 0.0, %v295
      %v299 = vmul.f32 %v296, 1.442695
      %v300 = vpow.pop %v299
      %v301 = vmul.f32 %v297, 1.442695
      %v302 = vpow.pop %v301
      %v303 = vmul.f32 %v298, 1.442695
      %v304 = vpow.pop %v303
      %v305 = vadd.f32 %v300, 1.0
      %v306 = vlog2.pop %v305
      %v307 = vmul.f32 %v306, 0.6931472
      %v308 = vmul.f32 -0.5, %v300
      %v309 = vadd.f32 %v308, 1.0
      %v310 = vmul.f32 %v309, %v300
      %v311 = vand.u32 2147483647, %v300
      %vm312 = vcmp.lt.f32.partialorder %v311, 0.0004427343
      %v313 = vsel %vm312, %v310, %v307
      %v314 = vadd.f32 %v302, 1.0
      %v315 = vlog2.pop %v314
      %v316 = vmul.f32 %v315, 0.6931472
      %v317 = vmul.f32 -0.5, %v302
      %v318 = vadd.f32 %v317, 1.0
      %v319 = vmul.f32 %v318, %v302
      %v320 = vand.u32 2147483647, %v302
      %vm321 = vcmp.lt.f32.partialorder %v320, 0.0004427343
      %v322 = vsel %vm321, %v319, %v316
      %v323 = vadd.f32 %v304, 1.0
      %v324 = vlog2.pop %v323
      %v325 = vmul.f32 %v324, 0.6931472
      %v326 = vmul.f32 -0.5, %v304
      %v327 = vadd.f32 %v326, 1.0
      %v328 = vmul.f32 %v327, %v304
      %v329 = vand.u32 2147483647, %v304
      %vm330 = vcmp.lt.f32.partialorder %v329, 0.0004427343
      %v331 = vsel %vm330, %v328, %v325
      %v332 = vadd.f32 %v290, %v313
      %v333 = vadd.f32 %v291, %v322
      %v334 = vadd.f32 %v292, %v331
      %v335 = vld [vmem:[#allocation11 + $0x18] sm:$0xff]
      %v336 = vadd.f32 %v332, %v333
      %v337 = vadd.f32 %v336, %v334
      %v338 = vadd.f32 %v335, %v337
      %339 = vst [vmem:[#allocation11 + $0x18] sm:$0xff] %v338
    $region49: #{tpu_custom_call.1} parent=1 // pred_fallthru
      _
    // Predicated region
    $region50: #{tpu_custom_call.1} parent=1 // pred_check
      %p340 = pneg %p89
    $region51: #{tpu_custom_call.1} parent=1 // pred_check_branch
      %342 = sbr.rel (%p340) target = $region53
    $region52: #{tpu_custom_call.1} parent=1 // pred_region
      %v343 = vlaneseq
      %v344 = vshrl.u32 %v343, 7
      %v345 = vadd.s32 %v344, 8
      %v346 = vadd.s32 %v344, 16
      %s347 = smul.u32 0, 24
      %v348 = vstv %s347
      %v349 = vadd.s32 %v348, %v344
      %v350 = vadd.s32 %v348, %v345
      %v351 = vadd.s32 %v348, %v346
      %vm352 = vcmp.lt.s32.totalorder %v349, 20
      %vm353 = vcmp.lt.s32.totalorder %v350, 20
      %vm354 = vcmp.lt.s32.totalorder %v351, 20
      %v355 = vld [vmem:[#allocation10] sm:$0xff]
      %v356 = vld [vmem:[#allocation10 + $0x8] sm:$0xff]
      %v357 = vld [vmem:[#allocation10 + $0x10] sm:$0xff]
      %v358 = vld [vmem:[#allocation2] sm:$0xff]
      %v359 = vld [vmem:[#allocation2 + $0x8] sm:$0xff]
      %v360 = vld [vmem:[#allocation2 + $0x10] sm:$0xff]
      %v361 = vmax.f32 %v358, 0.0
      %v362 = vmax.f32 %v359, 0.0
      %v363 = vmax.f32 %v360, 0.0
      %v364 = vmul.f32 %v358, %v355
      %v365 = vmul.f32 %v359, %v356
      %v366 = vmul.f32 %v360, %v357
      %v367 = vsub.f32 %v361, %v364
      %v368 = vsub.f32 %v362, %v365
      %v369 = vsub.f32 %v363, %v366
      %v370 = vand.u32 2147483647, %v358
      %v371 = vand.u32 2147483647, %v359
      %v372 = vand.u32 2147483647, %v360
      %v373 = vsub.f32 0.0, %v370
      %v374 = vsub.f32 0.0, %v371
      %v375 = vsub.f32 0.0, %v372
      %v376 = vmul.f32 %v373, 1.442695
      %v377 = vpow.pop %v376
      %v378 = vmul.f32 %v374, 1.442695
      %v379 = vpow.pop %v378
      %v380 = vmul.f32 %v375, 1.442695
      %v381 = vpow.pop %v380
      %v382 = vadd.f32 %v377, 1.0
      %v383 = vlog2.pop %v382
      %v384 = vmul.f32 %v383, 0.6931472
      %v385 = vmul.f32 -0.5, %v377
      %v386 = vadd.f32 %v385, 1.0
      %v387 = vmul.f32 %v386, %v377
      %v388 = vand.u32 2147483647, %v377
      %vm389 = vcmp.lt.f32.partialorder %v388, 0.0004427343
      %v390 = vsel %vm389, %v387, %v384
      %v391 = vadd.f32 %v379, 1.0
      %v392 = vlog2.pop %v391
      %v393 = vmul.f32 %v392, 0.6931472
      %v394 = vmul.f32 -0.5, %v379
      %v395 = vadd.f32 %v394, 1.0
      %v396 = vmul.f32 %v395, %v379
      %v397 = vand.u32 2147483647, %v379
      %vm398 = vcmp.lt.f32.partialorder %v397, 0.0004427343
      %v399 = vsel %vm398, %v396, %v393
      %v400 = vadd.f32 %v381, 1.0
      %v401 = vlog2.pop %v400
      %v402 = vmul.f32 %v401, 0.6931472
      %v403 = vmul.f32 -0.5, %v381
      %v404 = vadd.f32 %v403, 1.0
      %v405 = vmul.f32 %v404, %v381
      %v406 = vand.u32 2147483647, %v381
      %vm407 = vcmp.lt.f32.partialorder %v406, 0.0004427343
      %v408 = vsel %vm407, %v405, %v402
      %v409 = vadd.f32 %v367, %v390
      %v410 = vadd.f32 %v368, %v399
      %v411 = vadd.f32 %v369, %v408
      %v412 = vsel %vm352, %v409, 0.0
      %v413 = vsel %vm353, %v410, 0.0
      %v414 = vsel %vm354, %v411, 0.0
      %v415 = vld [vmem:[#allocation11] sm:$0xff]
      %v416 = vadd.f32 %v412, %v413
      %v417 = vadd.f32 %v416, %v414
      %v418 = vadd.f32 %v415, %v417
      %419 = vst [vmem:[#allocation11] sm:$0xff] %v418
      %v420 = vld [vmem:[#allocation5] sm:$0xff]
      %v421 = vld [vmem:[#allocation5 + $0x8] sm:$0xff]
      %v422 = vld [vmem:[#allocation5 + $0x10] sm:$0xff]
      %v423 = vmax.f32 %v420, 0.0
      %v424 = vmax.f32 %v421, 0.0
      %v425 = vmax.f32 %v422, 0.0
      %v426 = vmul.f32 %v420, %v355
      %v427 = vmul.f32 %v421, %v356
      %v428 = vmul.f32 %v422, %v357
      %v429 = vsub.f32 %v423, %v426
      %v430 = vsub.f32 %v424, %v427
      %v431 = vsub.f32 %v425, %v428
      %v432 = vand.u32 2147483647, %v420
      %v433 = vand.u32 2147483647, %v421
      %v434 = vand.u32 2147483647, %v422
      %v435 = vsub.f32 0.0, %v432
      %v436 = vsub.f32 0.0, %v433
      %v437 = vsub.f32 0.0, %v434
      %v438 = vmul.f32 %v435, 1.442695
      %v439 = vpow.pop %v438
      %v440 = vmul.f32 %v436, 1.442695
      %v441 = vpow.pop %v440
      %v442 = vmul.f32 %v437, 1.442695
      %v443 = vpow.pop %v442
      %v444 = vadd.f32 %v439, 1.0
      %v445 = vlog2.pop %v444
      %v446 = vmul.f32 %v445, 0.6931472
      %v447 = vmul.f32 -0.5, %v439
      %v448 = vadd.f32 %v447, 1.0
      %v449 = vmul.f32 %v448, %v439
      %v450 = vand.u32 2147483647, %v439
      %vm451 = vcmp.lt.f32.partialorder %v450, 0.0004427343
      %v452 = vsel %vm451, %v449, %v446
      %v453 = vadd.f32 %v441, 1.0
      %v454 = vlog2.pop %v453
      %v455 = vmul.f32 %v454, 0.6931472
      %v456 = vmul.f32 -0.5, %v441
      %v457 = vadd.f32 %v456, 1.0
      %v458 = vmul.f32 %v457, %v441
      %v459 = vand.u32 2147483647, %v441
      %vm460 = vcmp.lt.f32.partialorder %v459, 0.0004427343
      %v461 = vsel %vm460, %v458, %v455
      %v462 = vadd.f32 %v443, 1.0
      %v463 = vlog2.pop %v462
      %v464 = vmul.f32 %v463, 0.6931472
      %v465 = vmul.f32 -0.5, %v443
      %v466 = vadd.f32 %v465, 1.0
      %v467 = vmul.f32 %v466, %v443
      %v468 = vand.u32 2147483647, %v443
      %vm469 = vcmp.lt.f32.partialorder %v468, 0.0004427343
      %v470 = vsel %vm469, %v467, %v464
      %v471 = vadd.f32 %v429, %v452
      %v472 = vadd.f32 %v430, %v461
      %v473 = vadd.f32 %v431, %v470
      %v474 = vsel %vm352, %v471, 0.0
      %v475 = vsel %vm353, %v472, 0.0
      %v476 = vsel %vm354, %v473, 0.0
      %v477 = vld [vmem:[#allocation11 + $0x8] sm:$0xff]
      %v478 = vadd.f32 %v474, %v475
      %v479 = vadd.f32 %v478, %v476
      %v480 = vadd.f32 %v477, %v479
      %481 = vst [vmem:[#allocation11 + $0x8] sm:$0xff] %v480
      %v482 = vld [vmem:[#allocation7] sm:$0xff]
      %v483 = vld [vmem:[#allocation7 + $0x8] sm:$0xff]
      %v484 = vld [vmem:[#allocation7 + $0x10] sm:$0xff]
      %v485 = vmax.f32 %v482, 0.0
      %v486 = vmax.f32 %v483, 0.0
      %v487 = vmax.f32 %v484, 0.0
      %v488 = vmul.f32 %v482, %v355
      %v489 = vmul.f32 %v483, %v356
      %v490 = vmul.f32 %v484, %v357
      %v491 = vsub.f32 %v485, %v488
      %v492 = vsub.f32 %v486, %v489
      %v493 = vsub.f32 %v487, %v490
      %v494 = vand.u32 2147483647, %v482
      %v495 = vand.u32 2147483647, %v483
      %v496 = vand.u32 2147483647, %v484
      %v497 = vsub.f32 0.0, %v494
      %v498 = vsub.f32 0.0, %v495
      %v499 = vsub.f32 0.0, %v496
      %v500 = vmul.f32 %v497, 1.442695
      %v501 = vpow.pop %v500
      %v502 = vmul.f32 %v498, 1.442695
      %v503 = vpow.pop %v502
      %v504 = vmul.f32 %v499, 1.442695
      %v505 = vpow.pop %v504
      %v506 = vadd.f32 %v501, 1.0
      %v507 = vlog2.pop %v506
      %v508 = vmul.f32 %v507, 0.6931472
      %v509 = vmul.f32 -0.5, %v501
      %v510 = vadd.f32 %v509, 1.0
      %v511 = vmul.f32 %v510, %v501
      %v512 = vand.u32 2147483647, %v501
      %vm513 = vcmp.lt.f32.partialorder %v512, 0.0004427343
      %v514 = vsel %vm513, %v511, %v508
      %v515 = vadd.f32 %v503, 1.0
      %v516 = vlog2.pop %v515
      %v517 = vmul.f32 %v516, 0.6931472
      %v518 = vmul.f32 -0.5, %v503
      %v519 = vadd.f32 %v518, 1.0
      %v520 = vmul.f32 %v519, %v503
      %v521 = vand.u32 2147483647, %v503
      %vm522 = vcmp.lt.f32.partialorder %v521, 0.0004427343
      %v523 = vsel %vm522, %v520, %v517
      %v524 = vadd.f32 %v505, 1.0
      %v525 = vlog2.pop %v524
      %v526 = vmul.f32 %v525, 0.6931472
      %v527 = vmul.f32 -0.5, %v505
      %v528 = vadd.f32 %v527, 1.0
      %v529 = vmul.f32 %v528, %v505
      %v530 = vand.u32 2147483647, %v505
      %vm531 = vcmp.lt.f32.partialorder %v530, 0.0004427343
      %v532 = vsel %vm531, %v529, %v526
      %v533 = vadd.f32 %v491, %v514
      %v534 = vadd.f32 %v492, %v523
      %v535 = vadd.f32 %v493, %v532
      %v536 = vsel %vm352, %v533, 0.0
      %v537 = vsel %vm353, %v534, 0.0
      %v538 = vsel %vm354, %v535, 0.0
      %v539 = vld [vmem:[#allocation11 + $0x10] sm:$0xff]
      %v540 = vadd.f32 %v536, %v537
      %v541 = vadd.f32 %v540, %v538
      %v542 = vadd.f32 %v539, %v541
      %543 = vst [vmem:[#allocation11 + $0x10] sm:$0xff] %v542
      %v544 = vld [vmem:[#allocation8] sm:$0xff]
      %v545 = vld [vmem:[#allocation8 + $0x8] sm:$0xff]
      %v546 = vld [vmem:[#allocation8 + $0x10] sm:$0xff]
      %v547 = vmax.f32 %v544, 0.0
      %v548 = vmax.f32 %v545, 0.0
      %v549 = vmax.f32 %v546, 0.0
      %v550 = vmul.f32 %v544, %v355
      %v551 = vmul.f32 %v545, %v356
      %v552 = vmul.f32 %v546, %v357
      %v553 = vsub.f32 %v547, %v550
      %v554 = vsub.f32 %v548, %v551
      %v555 = vsub.f32 %v549, %v552
      %v556 = vand.u32 2147483647, %v544
      %v557 = vand.u32 2147483647, %v545
      %v558 = vand.u32 2147483647, %v546
      %v559 = vsub.f32 0.0, %v556
      %v560 = vsub.f32 0.0, %v557
      %v561 = vsub.f32 0.0, %v558
      %v562 = vmul.f32 %v559, 1.442695
      %v563 = vpow.pop %v562
      %v564 = vmul.f32 %v560, 1.442695
      %v565 = vpow.pop %v564
      %v566 = vmul.f32 %v561, 1.442695
      %v567 = vpow.pop %v566
      %v568 = vadd.f32 %v563, 1.0
      %v569 = vlog2.pop %v568
      %v570 = vmul.f32 %v569, 0.6931472
      %v571 = vmul.f32 -0.5, %v563
      %v572 = vadd.f32 %v571, 1.0
      %v573 = vmul.f32 %v572, %v563
      %v574 = vand.u32 2147483647, %v563
      %vm575 = vcmp.lt.f32.partialorder %v574, 0.0004427343
      %v576 = vsel %vm575, %v573, %v570
      %v577 = vadd.f32 %v565, 1.0
      %v578 = vlog2.pop %v577
      %v579 = vmul.f32 %v578, 0.6931472
      %v580 = vmul.f32 -0.5, %v565
      %v581 = vadd.f32 %v580, 1.0
      %v582 = vmul.f32 %v581, %v565
      %v583 = vand.u32 2147483647, %v565
      %vm584 = vcmp.lt.f32.partialorder %v583, 0.0004427343
      %v585 = vsel %vm584, %v582, %v579
      %v586 = vadd.f32 %v567, 1.0
      %v587 = vlog2.pop %v586
      %v588 = vmul.f32 %v587, 0.6931472
      %v589 = vmul.f32 -0.5, %v567
      %v590 = vadd.f32 %v589, 1.0
      %v591 = vmul.f32 %v590, %v567
      %v592 = vand.u32 2147483647, %v567
      %vm593 = vcmp.lt.f32.partialorder %v592, 0.0004427343
      %v594 = vsel %vm593, %v591, %v588
      %v595 = vadd.f32 %v553, %v576
      %v596 = vadd.f32 %v554, %v585
      %v597 = vadd.f32 %v555, %v594
      %v598 = vsel %vm352, %v595, 0.0
      %v599 = vsel %vm353, %v596, 0.0
      %v600 = vsel %vm354, %v597, 0.0
      %v601 = vld [vmem:[#allocation11 + $0x18] sm:$0xff]
      %v602 = vadd.f32 %v598, %v599
      %v603 = vadd.f32 %v602, %v600
      %v604 = vadd.f32 %v601, %v603
      %605 = vst [vmem:[#allocation11 + $0x18] sm:$0xff] %v604
    $region53: #{tpu_custom_call.1} parent=1 // pred_fallthru
      _
    // Predicated region
    $region54: #{tpu_custom_call.1} parent=1 // pred_check
      _
    $region55: #{tpu_custom_call.1} parent=1 // pred_check_branch
      %607 = sbr.rel (0) target = $region57
    $region56: #{tpu_custom_call.1} parent=1 // pred_region
      %s609 = ssub.s32 512, 512
      %610 = vsyncadd [#allocation4], %s609
      %s611 = sshll.u32 [#allocation11], 4
      %s612 = int_to_ptr.vmem [resolvable:$true] %s611
      %617 = dma.vmem_to_hbm [thread:$0]  %s612, 512, %s5, [#allocation4], 128, 128, 8
    $region57: #{tpu_custom_call.1} parent=1 // pred_fallthru
      _
    // Predicated region
    $region58: #{tpu_custom_call.1} parent=1 // pred_check
      _
    $region59: #{tpu_custom_call.1} parent=1 // pred_check_branch
      %619 = sbr.rel (0) target = $region61
    $region60: #{tpu_custom_call.1} parent=1 // pred_region
      %620 = dma.done [#allocation4], 512
    $region61: #{tpu_custom_call.1} parent=1 // pred_fallthru
      _
    %621 = vsyncpa [#allocation3], 1
    %622 = vsyncpa [#allocation6], 1
    %623 = vsyncpa [#allocation9], 1
    %624 = vsyncpa [#allocation4], 1

</llo_original>
